<compile_context>
chip_gen: v5e
topology: v5e:2x2
jax: 0.10.0
libtpu: 0.0.40
codegen_flags: <defaults>
</compile_context>

<pallas_src>
import functools

import jax
import jax.numpy as jnp
from jax.experimental import pallas as pl
from jax.experimental.pallas import tpu as pltpu

_LANE = 128
# Below this element count the fixed Pallas launch/pipeline overhead beats the
# ~2 reads of HBM traffic the kernel saves; plain XLA is strictly faster.
_SMALL_INPUT_ELEMS = 1 << 21


def _chip_params():
    """Return (ncores, max_tile_rows) tuned per TPU generation."""
    kind = ""
    try:
        kind = jax.devices()[0].device_kind.lower()
    except Exception:
        pass
    if "v7" in kind or "tpu7" in kind:
        # v7x: 2 TensorCores/chip -> 2-way split of the reduction; bigger
        # tiles amortize the ~0.35us/step grid overhead against ~1.2us DMAs.
        return 2, 8192
    # v5e / v6e are single-TensorCore: a leading "parallel" axis is just a
    # serial loop that duplicates one block per call, so keep it at 1.
    # 4096-row tiles (2 MiB f32/input) already saturate HBM there.
    return 1, 4096


def _rmse_partial_kernel(t_ref, p_ref, o_ref, acc_ref, *,
                         n_rows, n_blocks, tile_rows, acc_rows,
                         inner_steps, has_dup):
    c = pl.program_id(0)            # core slice ("parallel"; 1 or 2 slices)
    i = pl.program_id(1)            # sequential step within the slice
    block = c * inner_steps + i     # logical (unclamped) block index

    @pl.when(i == 0)
    def _():
        acc_ref[...] = jnp.zeros_like(acc_ref)

    # diff/square computed once; the (static) branch structure below decides
    # whether / how it is accumulated.
    d = t_ref[...].astype(jnp.float32) - p_ref[...].astype(jnp.float32)
    sq = d * d

    fold = tile_rows // acc_rows    # static Python int

    def _fold(x):
        if fold > 1:
            # vreg-wise accumulation into acc_rows*128/1024 independent vreg
            # chains (pure VALU; hides under the block DMA).
            return jnp.sum(x.reshape(fold, acc_rows, _LANE), axis=0)
        return x

    ragged = (n_rows % tile_rows) != 0   # static Python bool

    if ragged:
        # Interior blocks: fast unmasked accumulate.
        @pl.when(block < n_blocks - 1)
        def _():
            acc_ref[...] += _fold(sq)

        # Boundary block only: row-granular mask (lanes are always full on
        # this path because n_elems % 128 == 0). Any stale-VMEM garbage in
        # the partially-DMA'd tail rows is discarded by the select.
        @pl.when(block == n_blocks - 1)
        def _():
            row0 = (n_blocks - 1) * tile_rows
            row = row0 + jax.lax.broadcasted_iota(jnp.int32, (tile_rows, 1), 0)
            acc_ref[...] += _fold(jnp.where(row < n_rows, sq, 0.0))
        # Clamped duplicate blocks (block >= n_blocks) take neither branch.
    elif has_dup:
        # No ragged tail, but the core split produced a clamped duplicate
        # block: skip its accumulation (its DMA result is simply unused).
        @pl.when(block < n_blocks)
        def _():
            acc_ref[...] += _fold(sq)
    else:
        # Steady state: no masking, no gating at all.
        acc_ref[...] += _fold(sq)

    @pl.when(i == pl.num_programs(1) - 1)
    def _():
        # Per-core partial sum of squared errors (single cross-lane reduce).
        o_ref[0, 0] = jnp.sum(acc_ref[...])


def rmse_loss(truth, predict, bias=None, *,
              min_kernel_elems=_SMALL_INPUT_ELEMS, max_tile_rows=None):
    """sqrt(mean((truth - predict)**2)); `bias` is accepted and ignored,
    matching the original module's forward signature."""
    del bias
    assert truth.shape == predict.shape, "truth/predict shapes must match"
    n_elems = int(truth.size)
    if n_elems == 0:
        return jnp.float32(jnp.nan)   # torch MSELoss(mean) on empty -> nan

    inv_n = 1.0 / float(n_elems)      # exact f64 reciprocal, rounded once

    # Fast path: tiny tensors (fixed kernel overhead dominates) and element
    # counts that are not a multiple of 128 lanes (a kernel path would need a
    # full-array pad copy costing more HBM traffic than XLA's fused reduce).
    if n_elems < min_kernel_elems or n_elems % _LANE != 0:
        d = truth.astype(jnp.float32) - predict.astype(jnp.float32)
        return jnp.sqrt(jnp.sum(d * d) * jnp.float32(inv_n))

    ncores, default_tile = _chip_params()
    if max_tile_rows is None:
        max_tile_rows = default_tile

    n_rows = n_elems // _LANE
    t = truth.reshape(n_rows, _LANE)      # contiguous reshape: no copy
    p = predict.reshape(n_rows, _LANE)

    tile_rows = n_rows if n_rows <= max_tile_rows else max_tile_rows
    n_blocks = pl.cdiv(n_rows, tile_rows)
    if n_blocks < ncores:
        ncores = 1                        # never split fewer blocks than cores
    inner_steps = pl.cdiv(n_blocks, ncores)
    has_dup = (ncores * inner_steps) != n_blocks

    # Accumulator width: as many independent vreg chains as tile_rows allows.
    if tile_rows % 256 == 0:
        acc_rows = 256
    elif tile_rows % 64 == 0:
        acc_rows = 64
    elif tile_rows % 8 == 0:
        acc_rows = 8
    else:
        acc_rows = tile_rows              # tiny forced-kernel inputs only

    def in_map(c, i):
        # Clamp so DMAs never start past the array; the kernel skips the
        # (at most one per core) clamped duplicate block's accumulation.
        return (jnp.minimum(c * inner_steps + i, n_blocks - 1), 0)

    kernel = functools.partial(
        _rmse_partial_kernel, n_rows=n_rows, n_blocks=n_blocks,
        tile_rows=tile_rows, acc_rows=acc_rows, inner_steps=inner_steps,
        has_dup=has_dup)

    cp_kwargs = dict(dimension_semantics=("parallel", "arbitrary"))
    if tile_rows > 4096:
        # 8192-row f32 tiles: 2 inputs x 2 buffers x 4 MiB = 16 MiB plus
        # in-kernel temporaries; give the compiler explicit headroom.
        cp_kwargs["vmem_limit_bytes"] = 48 * 1024 * 1024

    # TODO(synk): verify with xprof that the leading "parallel" axis actually
    # shards across both TensorCores on v7x; if not, switch it to
    # pltpu.CORE_PARALLEL.
    partial = pl.pallas_call(
        kernel,
        out_shape=jax.ShapeDtypeStruct((ncores, 1), jnp.float32),
        grid_spec=pltpu.PrefetchScalarGridSpec(
            num_scalar_prefetch=0,
            grid=(ncores, inner_steps),
            in_specs=[
                pl.BlockSpec((tile_rows, _LANE), in_map),
                pl.BlockSpec((tile_rows, _LANE), in_map),
            ],
            out_specs=pl.BlockSpec((1, 1), lambda c, i: (c, 0),
                                   memory_space=pltpu.SMEM),
            scratch_shapes=[pltpu.VMEM((acc_rows, _LANE), jnp.float32)],
        ),
        compiler_params=pltpu.CompilerParams(**cp_kwargs),
    )(t, p)

    # Combine per-core partial sums; mean over the true element count.
    return jnp.sqrt(jnp.sum(partial) * jnp.float32(inv_n))


if __name__ == "__main__":
    key = jax.random.PRNGKey(0)
    k1, k2, k3, k4 = jax.random.split(key, 4)

    def ref_rmse(t, p):
        d = t.astype(jnp.float32) - p.astype(jnp.float32)
        return jnp.sqrt(jnp.mean(d * d))

    # 1) Small NCHW input via the default path (XLA fast path for tiny sizes).
    shape = (2, 4, 16, 16)
    truth = jax.random.normal(k1, shape, dtype=jnp.float32)
    pred = jax.random.normal(k2, shape, dtype=jnp.float32)
    out_fast = rmse_loss(truth, pred)
    jax.block_until_ready(out_fast)
    assert jnp.allclose(out_fast, ref_rmse(truth, pred), rtol=1e-5, atol=1e-6)

    # 2) Same input forced through the Pallas kernel path (single block).
    out_kernel = rmse_loss(truth, pred, min_kernel_elems=0)
    jax.block_until_ready(out_kernel)
    assert jnp.allclose(out_kernel, ref_rmse(truth, pred), rtol=1e-5, atol=1e-6)

    # 3) Multi-block + ragged boundary block (40 rows of 128, 16-row tiles):
    #    exercises the gated mask and the clamped-duplicate skip.
    shape3 = (2, 4, 40, 16)
    t3 = jax.random.normal(k3, shape3, dtype=jnp.float32)
    p3 = jax.random.normal(k4, shape3, dtype=jnp.float32)
    out3 = rmse_loss(t3, p3, min_kernel_elems=0, max_tile_rows=16)
    jax.block_until_ready(out3)
    assert jnp.allclose(out3, ref_rmse(t3, p3), rtol=1e-5, atol=1e-6)

    # 4) bf16 inputs through the kernel path (cast to f32 in-vreg).
    t4 = truth.astype(jnp.bfloat16)
    p4 = pred.astype(jnp.bfloat16)
    out4 = rmse_loss(t4, p4, min_kernel_elems=0)
    jax.block_until_ready(out4)
    assert jnp.allclose(out4, ref_rmse(t4, p4), rtol=1e-4, atol=1e-5)

    print("KERNEL_OK")
</pallas_src>

<mosaic_0001>
module attributes {stable_mosaic.version = 11 : i64} {
  func.func @_rmse_partial_kernel(%arg0: i32, %arg1: i32, %arg2: memref<16x128xf32, #tpu.memory_space<vmem>>, %arg3: memref<16x128xf32, #tpu.memory_space<vmem>>, %arg4: memref<1x1xf32, #tpu.memory_space<smem>>, %arg5: memref<8x128xf32, #tpu.memory_space<vmem>>) attributes {dimension_semantics = [#tpu.dimension_semantics<parallel>, #tpu.dimension_semantics<arbitrary>], iteration_bounds = array<i64: 1, 1>, scalar_prefetch = 0 : i64, scratch_operands = 1 : i64, tpu.core_type = #tpu.core_type<tc>, window_params = [{transform_indices = @transform_0, window_bounds = array<i64: 16, 128>}, {transform_indices = @transform_1, window_bounds = array<i64: 16, 128>}, {transform_indices = @transform_2, window_bounds = array<i64: 1, 1>}]} {
    %c0_i32 = arith.constant 0 : i32
    %0 = arith.cmpi eq, %arg1, %c0_i32 : i32
    %1 = arith.extui %0 : i1 to i32
    %c0_i32_0 = arith.constant 0 : i32
    %2 = arith.cmpi ne, %1, %c0_i32_0 : i32
    scf.if %2 {
      %cst_10 = arith.constant 0.000000e+00 : f32
      %15 = vector.broadcast %cst_10 : f32 to vector<8x128xf32>
      %c0_11 = arith.constant 0 : index
      %c0_12 = arith.constant 0 : index
      %16 = vector.load %arg5[%c0_11, %c0_12] : memref<8x128xf32, #tpu.memory_space<vmem>>, vector<8x128xf32>
      tpu.vector_store %arg5[%c0_11, %c0_12], %15 {strides = array<i32>} : memref<8x128xf32, #tpu.memory_space<vmem>>, vector<8x128xf32>,
    } else {
    }
    %c0 = arith.constant 0 : index
    %c0_1 = arith.constant 0 : index
    %3 = vector.load %arg2[%c0, %c0_1] : memref<16x128xf32, #tpu.memory_space<vmem>>, vector<16x128xf32>
    %c0_2 = arith.constant 0 : index
    %c0_3 = arith.constant 0 : index
    %4 = vector.load %arg3[%c0_2, %c0_3] : memref<16x128xf32, #tpu.memory_space<vmem>>, vector<16x128xf32>
    %5 = arith.subf %3, %4 : vector<16x128xf32>
    %6 = arith.mulf %5, %5 : vector<16x128xf32>
    %c0_4 = arith.constant 0 : index
    %c0_5 = arith.constant 0 : index
    %7 = vector.load %arg5[%c0_4, %c0_5] : memref<8x128xf32, #tpu.memory_space<vmem>>, vector<8x128xf32>
    %8 = vector.shape_cast %6 : vector<16x128xf32> to vector<2x8x128xf32>
    %cst = arith.constant dense<0.000000e+00> : vector<8x128xf32>
    %9 = vector.multi_reduction <add>, %8, %cst [0] : vector<2x8x128xf32> to vector<8x128xf32>
    %10 = arith.addf %7, %9 : vector<8x128xf32>
    %c0_6 = arith.constant 0 : index
    %c0_7 = arith.constant 0 : index
    %11 = vector.load %arg5[%c0_6, %c0_7] : memref<8x128xf32, #tpu.memory_space<vmem>>, vector<8x128xf32>
    tpu.vector_store %arg5[%c0_6, %c0_7], %10 {strides = array<i32>} : memref<8x128xf32, #tpu.memory_space<vmem>>, vector<8x128xf32>,
    %c0_i32_8 = arith.constant 0 : i32
    %12 = arith.cmpi eq, %arg1, %c0_i32_8 : i32
    %13 = arith.extui %12 : i1 to i32
    %c0_i32_9 = arith.constant 0 : i32
    %14 = arith.cmpi ne, %13, %c0_i32_9 : i32
    scf.if %14 {
      %c0_10 = arith.constant 0 : index
      %c0_11 = arith.constant 0 : index
      %15 = vector.load %arg5[%c0_10, %c0_11] : memref<8x128xf32, #tpu.memory_space<vmem>>, vector<8x128xf32>
      %16 = vector.shape_cast %15 : vector<8x128xf32> to vector<1x8x128xf32>
      %cst_12 = arith.constant dense<0.000000e+00> : vector<1xf32>
      %17 = vector.multi_reduction <add>, %16, %cst_12 [1, 2] : vector<1x8x128xf32> to vector<1xf32>
      %18 = vector.shape_cast %17 : vector<1xf32> to vector<1x1x1xf32>
      %19 = vector.extract %18[0, 0, 0] : f32 from vector<1x1x1xf32>
      %c0_13 = arith.constant 0 : index
      %c0_14 = arith.constant 0 : index
      %20 = memref.load %arg4[%c0_13, %c0_14] : memref<1x1xf32, #tpu.memory_space<smem>>
      memref.store %19, %arg4[%c0_13, %c0_14] : memref<1x1xf32, #tpu.memory_space<smem>>
    } else {
    }
    return
  }
  func.func @transform_0(%arg0: i32, %arg1: i32) -> (i32, i32) {
    %c1_i32 = arith.constant 1 : i32
    %0 = arith.muli %arg0, %c1_i32 : i32
    %1 = arith.addi %0, %arg1 : i32
    %c0_i32 = arith.constant 0 : i32
    %2 = arith.minsi %1, %c0_i32 : i32
    %c0_i32_0 = arith.constant 0 : i32
    %c0_i32_1 = arith.constant 0 : i32
    return %2, %c0_i32_0 : i32, i32
  }
  func.func @transform_1(%arg0: i32, %arg1: i32) -> (i32, i32) {
    %c1_i32 = arith.constant 1 : i32
    %0 = arith.muli %arg0, %c1_i32 : i32
    %1 = arith.addi %0, %arg1 : i32
    %c0_i32 = arith.constant 0 : i32
    %2 = arith.minsi %1, %c0_i32 : i32
    %c0_i32_0 = arith.constant 0 : i32
    %c0_i32_1 = arith.constant 0 : i32
    return %2, %c0_i32_0 : i32, i32
  }
  func.func @transform_2(%arg0: i32, %arg1: i32) -> (i32, i32) {
    %c0_i32 = arith.constant 0 : i32
    %c0_i32_0 = arith.constant 0 : i32
    return %arg0, %c0_i32 : i32, i32
  }
}

</mosaic_0001>

<llo_original>
// kernel: tpu_custom_call.1
$region0: #{tpu_custom_call.1}
  #allocation0 [shape = 'u32[]', space=smem, size = 0x4, offset = 0x4, fixed_abs, tag = 'smem constant byte address 0x4 - core index']
  #allocation1 [shape = 'u32[72,128]{1,0:T(1,128)}', space=vmem, size = 0x9000, scoped, tag = 'internal scratch']
  #allocation2 [shape = 'f32[8,128]{1,0:T(8,128)}', space=vmem, size = 0x1000, scoped, tag = 'scratch operand']
  %s0 = inlined_call_operand.hbm [shape: f32[16,128], index: 0, kind: input, shape index: {}]
  %s1 = inlined_call_operand.hbm [shape: f32[16,128], index: 1, kind: input, shape index: {}]
  %s2 = inlined_call_operand.hbm [shape: f32[1,1], index: 2, kind: output, shape index: {}]
  %s3 = sld [smem:[#allocation0]]
  $region34: #{tpu_custom_call.1} parent=0
    _
  %s5 = ssub.s32 1, %s3
  %s6 = scalar_select 0, %s5, %s3
  $region1: #{tpu_custom_call.1} parent=0
    #allocation3 [shape = 'u8[8192]{0}', space=vmem, size = 0x2000, scoped, tag = 'input window, operand 0, single buffered']
    #allocation4 [shape = 's32[1]{0}', space=sflag, size = 0x4, scoped, tag = 'scoped memory for tpu_custom_call.1']
    #allocation5 [shape = 's32[1]{0}', space=sflag, size = 0x4, scoped, tag = 'scoped memory for tpu_custom_call.1']
    #allocation6 [shape = 'u8[8192]{0}', space=vmem, size = 0x2000, scoped, tag = 'input window, operand 1, single buffered']
    #allocation7 [shape = 's32[1]{0}', space=sflag, size = 0x4, scoped, tag = 'scoped memory for tpu_custom_call.1']
    #allocation8 [shape = 'u8[512]{0}', space=smem, size = 0x200, scoped, tag = 'output window, operand 0, single buffered']
    %7 = vsyncpa [#allocation4], 0
    %8 = vsyncpa [#allocation7], 0
    %9 = vsyncpa [#allocation5], 0
    // Predicated region
    $region2: #{tpu_custom_call.1} parent=1 // pred_check
      _
    $region3: #{tpu_custom_call.1} parent=1 // pred_check_branch
      %11 = sbr.rel (0) target = $region5
    $region4: #{tpu_custom_call.1} parent=1 // pred_region
      %s12 = sadd.s32 0, 0
      %p13 = scmp.lt.s32.totalorder %s12, 0
      %s14 = scalar_select %p13, %s12, 0
      %s15 = smul.u32 2, %s14
      %17 = vsyncadd [#allocation4], 0
      %s18 = smul.addr %s15, 8
      %s19 = scalar_lea.hbm %s0, %s18
      %s20 = sshll.u32 %s19, 4
      %s21 = int_to_ptr.hbm [resolvable:$true] %s20
      %s22 = sshll.u32 [#allocation3], 4
      %s23 = int_to_ptr.vmem [resolvable:$true] %s22
      %28 = dma.hbm_to_vmem [thread:$0]  %s21, 256, %s23, [#allocation4], 128, 128, 8
    $region5: #{tpu_custom_call.1} parent=1 // pred_fallthru
      _
    // Predicated region
    $region6: #{tpu_custom_call.1} parent=1 // pred_check
      _
    $region7: #{tpu_custom_call.1} parent=1 // pred_check_branch
      %30 = sbr.rel (0) target = $region9
    $region8: #{tpu_custom_call.1} parent=1 // pred_region
      %s31 = sadd.s32 0, 0
      %p32 = scmp.lt.s32.totalorder %s31, 0
      %s33 = scalar_select %p32, %s31, 0
      %s34 = smul.u32 2, %s33
      %36 = vsyncadd [#allocation7], 0
      %s37 = smul.addr %s34, 8
      %s38 = scalar_lea.hbm %s1, %s37
      %s39 = sshll.u32 %s38, 4
      %s40 = int_to_ptr.hbm [resolvable:$true] %s39
      %s41 = sshll.u32 [#allocation6], 4
      %s42 = int_to_ptr.vmem [resolvable:$true] %s41
      %47 = dma.hbm_to_vmem [thread:$0]  %s40, 256, %s42, [#allocation7], 128, 128, 8
    $region9: #{tpu_custom_call.1} parent=1 // pred_fallthru
      _
    // Predicated region
    $region10: #{tpu_custom_call.1} parent=1 // pred_check
      _
    $region11: #{tpu_custom_call.1} parent=1 // pred_check_branch
      %49 = sbr.rel (0) target = $region13
    $region12: #{tpu_custom_call.1} parent=1 // pred_region
      %51 = dma.done [#allocation4], 256
    $region13: #{tpu_custom_call.1} parent=1 // pred_fallthru
      _
    // Predicated region
    $region14: #{tpu_custom_call.1} parent=1 // pred_check
      _
    $region15: #{tpu_custom_call.1} parent=1 // pred_check_branch
      %53 = sbr.rel (0) target = $region17
    $region16: #{tpu_custom_call.1} parent=1 // pred_region
      %55 = dma.done [#allocation7], 256
    $region17: #{tpu_custom_call.1} parent=1 // pred_fallthru
      _
    %s56 = sadd.s32 0, 0
    %p57 = scmp.lt.s32.totalorder %s56, 0
    %s58 = scalar_select %p57, %s56, 0
    %s59 = smul.u32 2, %s58
    %s60 = sadd.s32 0, 0
    %p61 = scmp.lt.s32.totalorder %s60, 0
    %s62 = scalar_select %p61, %s60, 0
    %s63 = smul.u32 2, %s62
    %p64 = scmp.eq.s32.totalorder 0, 0
    // Predicated region
    $region18: #{tpu_custom_call.1} parent=1 // pred_check
      %p65 = pneg %p64
    $region19: #{tpu_custom_call.1} parent=1 // pred_check_branch
      %67 = sbr.rel (%p65) target = $region21
    $region20: #{tpu_custom_call.1} parent=1 // pred_region
      %68 = vst [vmem:[#allocation2] sm:$0xff] 0.0
    $region21: #{tpu_custom_call.1} parent=1 // pred_fallthru
      _
    %v69 = vld [vmem:[#allocation3] sm:$0xff]
    %v70 = vld [vmem:[#allocation3 + $0x8] sm:$0xff]
    %v71 = vld [vmem:[#allocation6] sm:$0xff]
    %v72 = vld [vmem:[#allocation6 + $0x8] sm:$0xff]
    %v73 = vsub.f32 %v69, %v71
    %v74 = vsub.f32 %v70, %v72
    %v75 = vmul.f32 %v73, %v73
    %v76 = vmul.f32 %v74, %v74
    %v77 = vld [vmem:[#allocation2] sm:$0xff]
    %v78 = vadd.f32 %v75, %v76
    %v79 = vadd.f32 %v77, %v78
    %80 = vst [vmem:[#allocation2] sm:$0xff] %v79
    // Predicated region
    $region22: #{tpu_custom_call.1} parent=1 // pred_check
      %p81 = pneg %p64
    $region23: #{tpu_custom_call.1} parent=1 // pred_check_branch
      %83 = sbr.rel (%p81) target = $region25
    $region24: #{tpu_custom_call.1} parent=1 // pred_region
      %v84 = vld [vmem:[#allocation2] sm:$0xff]
      %85 = vadd.xlane.f32.xlu0 %v84
      %v86 = vpop.xlane.xlu0 %85
      %v87 = vrot.slane %v86, 4
      %v88 = vadd.f32 %v86, %v87
      %v89 = vrot.slane %v88, 2
      %v90 = vadd.f32 %v88, %v89
      %v91 = vrot.slane %v90, 1
      %v92 = vadd.f32 %v90, %v91
      %s93 = vtos %v92
      %s94 = scalar_lea.smem [#allocation8], 0
      %95 = sst [smem:[%s94]] %s93
    $region25: #{tpu_custom_call.1} parent=1 // pred_fallthru
      _
    // Predicated region
    $region26: #{tpu_custom_call.1} parent=1 // pred_check
      _
    $region27: #{tpu_custom_call.1} parent=1 // pred_check_branch
      %97 = sbr.rel (0) target = $region29
    $region28: #{tpu_custom_call.1} parent=1 // pred_region
      %99 = vsyncadd [#allocation5], 0
      %s101 = sshll.u32 %s2, 4
      %s102 = int_to_ptr.hbm [resolvable:$true] %s101
      %104 = dma.smem_to_hbm [#allocation8], 16, %s102, [#allocation5]
    $region29: #{tpu_custom_call.1} parent=1 // pred_fallthru
      _
    // Predicated region
    $region30: #{tpu_custom_call.1} parent=1 // pred_check
      _
    $region31: #{tpu_custom_call.1} parent=1 // pred_check_branch
      %106 = sbr.rel (0) target = $region33
    $region32: #{tpu_custom_call.1} parent=1 // pred_region
      %108 = dma.done [#allocation5], 16
    $region33: #{tpu_custom_call.1} parent=1 // pred_fallthru
      _
    %109 = sfence
    %110 = vsyncpa [#allocation4], 1
    %111 = vsyncpa [#allocation7], 1
    %112 = vsyncpa [#allocation5], 1

</llo_original>
